<compile_context>
chip_gen: v5e
topology: v5e:2x2
jax: 0.10.0
libtpu: 0.0.40
codegen_flags: <defaults>
</compile_context>

<pallas_src>
import functools

import jax
import jax.numpy as jnp
from jax.experimental import pallas as pl
from jax.experimental.pallas import tpu as pltpu


def _round_up(x, m):
    return -(-x // m) * m


def _pick_row_tile(m_levels):
    """Largest row tile (multiple of 16 == bf16 native sublane tile, never 8) with
    <=50% row-padding waste.  Larger tiles amortize per-grid-step overhead and keep
    output stores lane-dense / unmasked."""
    total = sum(m_levels)
    for cand in (8192, 4096, 2048, 1024, 512, 256, 128, 64, 32, 16):
        padded = sum(_round_up(m, cand) for m in m_levels)
        if padded <= (total * 3) // 2:
            return cand
    return 16


# ----------------------------------------------------------------------------
# Pallas kernel: one grid step = one row tile of one pyramid level.
#   lvl_ref : (num_tiles,) i32 in SMEM (scalar prefetch)  -- per-tile level id
#   x_ref   : (tm, C)        bf16  -- streamed
#   w_ref   : (L, C, 128)    bf16  -- VMEM-resident (constant index_map)
#   b_ref   : (L, 1, 128)    f32   -- VMEM-resident
#   o_ref   : (tm, 128)      bf16  -- f32 accumulate, bf16 store (halves writeback)
# ----------------------------------------------------------------------------
def _heads_matmul_kernel(lvl_ref, x_ref, w_ref, b_ref, o_ref):
    lvl = lvl_ref[pl.program_id(0)]
    acc = jnp.dot(x_ref[...], w_ref[lvl], preferred_element_type=jnp.float32)
    # NOTE: padded rows of the output contain the bias (acc=0 + b), not zeros; they
    # are sliced off in the wrapper before any downstream use.
    o_ref[...] = (acc + b_ref[lvl]).astype(o_ref.dtype)


def fused_heads_matmul(level_ids, x_all, w_stack, b_stack, tm):
    """level_ids: (num_tiles,) i32; x_all: (M_total, C) bf16;
    w_stack: (L, C, Cout_pad) bf16; b_stack: (L, 1, Cout_pad) f32."""
    M_total, C = x_all.shape
    L, _, Cout_pad = w_stack.shape
    num_tiles = M_total // tm

    return pl.pallas_call(
        _heads_matmul_kernel,
        out_shape=jax.ShapeDtypeStruct((M_total, Cout_pad), jnp.bfloat16),
        grid_spec=pltpu.PrefetchScalarGridSpec(
            num_scalar_prefetch=1,
            grid=(num_tiles,),
            in_specs=[
                # X: streamed row tiles; last dim == full array dim (no 128-pad on K).
                pl.BlockSpec((tm, C), lambda i, lvl: (i, 0)),
                # Weights / bias: whole stack resident in VMEM (constant block index
                # => DMA'd once, no re-fetch at level boundaries).
                pl.BlockSpec((L, C, Cout_pad), lambda i, lvl: (0, 0, 0)),
                pl.BlockSpec((L, 1, Cout_pad), lambda i, lvl: (0, 0, 0)),
            ],
            out_specs=pl.BlockSpec((tm, Cout_pad), lambda i, lvl: (i, 0)),
        ),
        compiler_params=pltpu.CompilerParams(
            # 1-D row-tile grid is embarrassingly parallel -> megacore sharding on v7x.
            dimension_semantics=("parallel",),
        ),
    )(level_ids, x_all, w_stack, b_stack)


# ----------------------------------------------------------------------------
# Parameter construction (deterministic, in-script).  Torch Conv2d(inC,outC,1)
# weight is (outC, inC, 1, 1); we keep the matmul-ready transposed (inC, outC).
# ----------------------------------------------------------------------------
def make_head_params(key, in_channels, anchor_num):
    out_bbox = anchor_num * 4
    out_cls = anchor_num * 2
    out_ldm = anchor_num * 10
    keys = jax.random.split(key, 6)
    scale = 1.0 / jnp.sqrt(jnp.float32(in_channels))
    return dict(
        w_bbox=jax.random.normal(keys[0], (in_channels, out_bbox), jnp.float32) * scale,
        b_bbox=jax.random.normal(keys[1], (out_bbox,), jnp.float32) * 0.01,
        w_cls=jax.random.normal(keys[2], (in_channels, out_cls), jnp.float32) * scale,
        b_cls=jax.random.normal(keys[3], (out_cls,), jnp.float32) * 0.01,
        w_ldm=jax.random.normal(keys[4], (in_channels, out_ldm), jnp.float32) * scale,
        b_ldm=jax.random.normal(keys[5], (out_ldm,), jnp.float32) * 0.01,
    )


def build_fused_weight_stack(params_per_level, in_channels, anchor_num):
    """Pre-fuse + pad (output lanes only) + stack the per-level head weights once.

    K (channel) dim is kept at the true in_channels -- no 128 padding (the zero
    K-padding buys nothing on the MXU and only burns HBM bandwidth on X).
    Cout is padded to 128 for lane-dense, unmasked stores."""
    cout = anchor_num * 16  # 4a + 2a + 10a
    Cout_pad = _round_up(cout, 128)
    w_list, b_list = [], []
    for p in params_per_level:
        w = jnp.concatenate([p["w_bbox"], p["w_cls"], p["w_ldm"]], axis=1)  # (C, cout)
        b = jnp.concatenate([p["b_bbox"], p["b_cls"], p["b_ldm"]], axis=0)  # (cout,)
        w = jnp.pad(w, ((0, 0), (0, Cout_pad - cout)))
        b = jnp.pad(b, (0, Cout_pad - cout))
        w_list.append(w.astype(jnp.bfloat16))
        b_list.append(b.reshape(1, Cout_pad).astype(jnp.float32))
    return jnp.stack(w_list, axis=0), jnp.stack(b_list, axis=0)


# ----------------------------------------------------------------------------
# RetinaFace head forward (matches the PyTorch permute/view/cat semantics).
# jitted so the NCHW->NHWC transpose, reshape, (row-)pad and concat fuse with the call.
# ----------------------------------------------------------------------------
@functools.partial(jax.jit, static_argnames=("anchor_num", "phase"))
def retinaface_heads_forward(features_nchw, w_stack, b_stack, *, anchor_num, phase="train"):
    C = w_stack.shape[1]

    shapes = [f.shape for f in features_nchw]
    m_levels = [n * h * w for (n, c, h, w) in shapes]
    tm = _pick_row_tile(m_levels)
    m_padded = [_round_up(m, tm) for m in m_levels]

    x_blocks, level_ids = [], []
    for lvl, (feat, m, mp) in enumerate(zip(features_nchw, m_levels, m_padded)):
        n, c, h, w = feat.shape
        assert c == C, (c, C)
        # NCHW -> NHWC -> (N*H*W, C)  (matches torch permute(0,2,3,1).view).
        x = jnp.transpose(feat, (0, 2, 3, 1)).reshape(m, c).astype(jnp.bfloat16)
        if mp != m:
            # Row padding only; each level is padded to a multiple of tm so no tile
            # ever straddles two levels (the level-id table relies on this).
            x = jnp.pad(x, ((0, mp - m), (0, 0)))
        x_blocks.append(x)
        level_ids.extend([lvl] * (mp // tm))

    x_all = jnp.concatenate(x_blocks, axis=0) if len(x_blocks) > 1 else x_blocks[0]
    level_ids = jnp.asarray(level_ids, dtype=jnp.int32)

    out = fused_heads_matmul(level_ids, x_all, w_stack, b_stack, tm)  # (M_total, 128) bf16

    nb, nc_, nl = anchor_num * 4, anchor_num * 2, anchor_num * 10
    bbox_list, cls_list, ldm_list = [], [], []
    row = 0
    for (n, c, h, w), m, mp in zip(shapes, m_levels, m_padded):
        lvl_out = out[row:row + m]          # drop padded rows (they hold the bias)
        row += mp
        bbox_list.append(lvl_out[:, :nb].astype(jnp.float32)
                         .reshape(n, h * w * anchor_num, 4))
        cls_list.append(lvl_out[:, nb:nb + nc_].astype(jnp.float32)
                        .reshape(n, h * w * anchor_num, 2))
        ldm_list.append(lvl_out[:, nb + nc_:nb + nc_ + nl].astype(jnp.float32)
                        .reshape(n, h * w * anchor_num, 10))

    bbox = jnp.concatenate(bbox_list, axis=1)
    cls = jnp.concatenate(cls_list, axis=1)
    ldm = jnp.concatenate(ldm_list, axis=1)
    if phase == "train":
        return bbox, cls, ldm
    return bbox, jax.nn.softmax(cls, axis=-1), ldm


# ----------------------------------------------------------------------------
# Pure-JAX references for correctness checks.
# ----------------------------------------------------------------------------
def reference_forward(features_nchw, params_per_level, anchor_num, phase="train",
                      compute_dtype=jnp.float32):
    bbox_list, cls_list, ldm_list = [], [], []
    for feat, p in zip(features_nchw, params_per_level):
        n, c, h, w = feat.shape
        x = jnp.transpose(feat, (0, 2, 3, 1)).reshape(n * h * w, c).astype(compute_dtype)

        def mm(wm, bv):
            return (jnp.dot(x, wm.astype(compute_dtype),
                            preferred_element_type=jnp.float32)
                    + bv.astype(jnp.float32))

        bbox_list.append(mm(p["w_bbox"], p["b_bbox"]).reshape(n, h * w * anchor_num, 4))
        cls_list.append(mm(p["w_cls"], p["b_cls"]).reshape(n, h * w * anchor_num, 2))
        ldm_list.append(mm(p["w_ldm"], p["b_ldm"]).reshape(n, h * w * anchor_num, 10))
    b = jnp.concatenate(bbox_list, axis=1)
    c = jnp.concatenate(cls_list, axis=1)
    l = jnp.concatenate(ldm_list, axis=1)
    if phase != "train":
        c = jax.nn.softmax(c, axis=-1)
    return b, c, l


if __name__ == "__main__":
    key = jax.random.PRNGKey(0)

    # Small config matching the module defaults: cfg['out_channel']=64, anchor_num=2,
    # 3 pyramid levels with strided spatial sizes.
    out_channel = 64
    anchor_num = 2
    N = 2
    spatial = [(16, 16), (8, 8), (4, 4)]

    k_feat, k_param = jax.random.split(key)
    feat_keys = jax.random.split(k_feat, 3)
    features = tuple(
        jax.random.normal(feat_keys[i], (N, out_channel, h, w), jnp.float32)
        for i, (h, w) in enumerate(spatial)
    )

    param_keys = jax.random.split(k_param, 3)
    params_per_level = [make_head_params(param_keys[i], out_channel, anchor_num)
                        for i in range(3)]
    w_stack, b_stack = build_fused_weight_stack(params_per_level, out_channel, anchor_num)

    bbox, cls, ldm = retinaface_heads_forward(
        features, w_stack, b_stack, anchor_num=anchor_num, phase="train")
    jax.block_until_ready((bbox, cls, ldm))

    # Shape checks (match torch.cat of per-level (N, H*W*a, k) outputs).
    total_anchors = sum(h * w * anchor_num for (h, w) in spatial)
    assert bbox.shape == (N, total_anchors, 4), bbox.shape
    assert cls.shape == (N, total_anchors, 2), cls.shape
    assert ldm.shape == (N, total_anchors, 10), ldm.shape

    # Check against a bf16-matmul reference (same math as the kernel); tolerance
    # accommodates the kernel's bf16 output store.
    rb16, rc16, rl16 = reference_forward(features, params_per_level, anchor_num, "train",
                                         compute_dtype=jnp.bfloat16)
    assert jnp.allclose(bbox, rb16, atol=2e-2, rtol=2e-2)
    assert jnp.allclose(cls, rc16, atol=2e-2, rtol=2e-2)
    assert jnp.allclose(ldm, rl16, atol=2e-2, rtol=2e-2)

    # Loose sanity check against the full-f32 reference (bf16 quantization only).
    rb32, rc32, rl32 = reference_forward(features, params_per_level, anchor_num, "train",
                                         compute_dtype=jnp.float32)
    assert jnp.allclose(bbox, rb32, atol=1e-1, rtol=1e-1)
    assert jnp.allclose(cls, rc32, atol=1e-1, rtol=1e-1)
    assert jnp.allclose(ldm, rl32, atol=1e-1, rtol=1e-1)

    print("KERNEL_OK")
</pallas_src>

<mosaic_0001>
module attributes {stable_mosaic.version = 11 : i64} {
  func.func @_heads_matmul_kernel(%arg0: i32, %arg1: memref<6xi32, #tpu.memory_space<smem>>, %arg2: memref<128x64xbf16, #tpu.memory_space<vmem>>, %arg3: memref<3x64x128xbf16, #tpu.memory_space<vmem>>, %arg4: memref<3x1x128xf32, #tpu.memory_space<vmem>>, %arg5: memref<128x128xbf16, #tpu.memory_space<vmem>>) attributes {dimension_semantics = [#tpu.dimension_semantics<parallel>], iteration_bounds = array<i64: 6>, scalar_prefetch = 1 : i64, scratch_operands = 0 : i64, tpu.core_type = #tpu.core_type<tc>, window_params = [{transform_indices = @transform_0, window_bounds = array<i64: 128, 64>}, {pipeline_mode = #tpu.pipeline_mode<synchronous>, transform_indices = @transform_1, window_bounds = array<i64: 3, 64, 128>}, {pipeline_mode = #tpu.pipeline_mode<synchronous>, transform_indices = @transform_2, window_bounds = array<i64: 3, 1, 128>}, {transform_indices = @transform_3, window_bounds = array<i64: 128, 128>}]} {
    %0 = arith.index_cast %arg0 : i32 to index
    %1 = memref.load %arg1[%0] : memref<6xi32, #tpu.memory_space<smem>>
    %c0 = arith.constant 0 : index
    %c0_0 = arith.constant 0 : index
    %2 = vector.load %arg2[%c0, %c0_0] : memref<128x64xbf16, #tpu.memory_space<vmem>>, vector<128x64xbf16>
    %3 = arith.index_cast %1 : i32 to index
    %c0_1 = arith.constant 0 : index
    %c0_2 = arith.constant 0 : index
    %4 = vector.load %arg3[%3, %c0_1, %c0_2] : memref<3x64x128xbf16, #tpu.memory_space<vmem>>, vector<1x64x128xbf16>
    %5 = vector.shape_cast %4 : vector<1x64x128xbf16> to vector<64x128xbf16>
    %cst = arith.constant dense<0.000000e+00> : vector<128x128xf32>
    %6 = tpu.matmul %2, %5, %cst {dimension_numbers = #tpu.dot_dimension_numbers<[1], [0], [0], [1], [0, 0, 1, 1], [], []>} : vector<128x64xbf16>, vector<64x128xbf16>, vector<128x128xf32> -> vector<128x128xf32>
    %7 = arith.index_cast %1 : i32 to index
    %c0_3 = arith.constant 0 : index
    %c0_4 = arith.constant 0 : index
    %8 = vector.load %arg4[%7, %c0_3, %c0_4] : memref<3x1x128xf32, #tpu.memory_space<vmem>>, vector<1x1x128xf32>
    %9 = vector.shape_cast %8 : vector<1x1x128xf32> to vector<1x128xf32>
    %10 = vector.broadcast %9 : vector<1x128xf32> to vector<128x128xf32>
    %11 = arith.addf %6, %10 : vector<128x128xf32>
    %12 = arith.truncf %11 : vector<128x128xf32> to vector<128x128xbf16>
    %c0_5 = arith.constant 0 : index
    %c0_6 = arith.constant 0 : index
    %13 = vector.load %arg5[%c0_5, %c0_6] : memref<128x128xbf16, #tpu.memory_space<vmem>>, vector<128x128xbf16>
    tpu.vector_store %arg5[%c0_5, %c0_6], %12 {strides = array<i32>} : memref<128x128xbf16, #tpu.memory_space<vmem>>, vector<128x128xbf16>,
    return
  }
  func.func @transform_0(%arg0: i32, %arg1: memref<6xi32, #tpu.memory_space<smem>>) -> (i32, i32) {
    %c0_i32 = arith.constant 0 : i32
    %c0_i32_0 = arith.constant 0 : i32
    return %arg0, %c0_i32 : i32, i32
  }
  func.func @transform_1(%arg0: i32, %arg1: memref<6xi32, #tpu.memory_space<smem>>) -> (i32, i32, i32) {
    %c0_i32 = arith.constant 0 : i32
    %c0_i32_0 = arith.constant 0 : i32
    %c0_i32_1 = arith.constant 0 : i32
    %c0_i32_2 = arith.constant 0 : i32
    return %c0_i32, %c0_i32_0, %c0_i32_1 : i32, i32, i32
  }
  func.func @transform_2(%arg0: i32, %arg1: memref<6xi32, #tpu.memory_space<smem>>) -> (i32, i32, i32) {
    %c0_i32 = arith.constant 0 : i32
    %c0_i32_0 = arith.constant 0 : i32
    %c0_i32_1 = arith.constant 0 : i32
    %c0_i32_2 = arith.constant 0 : i32
    return %c0_i32, %c0_i32_0, %c0_i32_1 : i32, i32, i32
  }
  func.func @transform_3(%arg0: i32, %arg1: memref<6xi32, #tpu.memory_space<smem>>) -> (i32, i32) {
    %c0_i32 = arith.constant 0 : i32
    %c0_i32_0 = arith.constant 0 : i32
    return %arg0, %c0_i32 : i32, i32
  }
}

</mosaic_0001>

<llo_original>
// kernel: retinaface_heads_forward.1
$region0: #{retinaface_heads_forward.1}
  #allocation0 [shape = 'u32[]', space=smem, size = 0x4, offset = 0x4, fixed_abs, tag = 'smem constant byte address 0x4 - core index']
  #allocation1 [shape = 'u32[72,128]{1,0:T(1,128)}', space=vmem, size = 0x9000, scoped, tag = 'internal scratch']
  #allocation2 [shape = 's32[1]{0}', space=sflag, size = 0x4, scoped, tag = 'scoped memory for retinaface_heads_forward.1']
  #allocation3 [shape = 'u8[512]{0}', space=smem, size = 0x200, scoped, tag = 'prefetched SMEM operand 0']
  %s0 = inlined_call_operand.vmem [shape: s32[6], index: 0, kind: input, shape index: {}]
  %s1 = inlined_call_operand.vmem [shape: bf16[768,64], index: 1, kind: input, shape index: {}]
  %s2 = inlined_call_operand.vmem [shape: bf16[3,64,128], index: 2, kind: input, shape index: {}]
  %s3 = inlined_call_operand.vmem [shape: f32[3,1,128], index: 3, kind: input, shape index: {}]
  %s4 = inlined_call_operand.vmem [shape: bf16[768,128], index: 4, kind: output, shape index: {}]
  %s5 = sld [smem:[#allocation0]]
  $region45: #{retinaface_heads_forward.1} parent=0
    _
  %s7 = ssub.s32 1, %s5
  %s8 = scalar_select 0, %s7, %s5
  %s10 = sshll.u32 %s0, 4
  %s11 = int_to_ptr.vmem [resolvable:$true] %s10
  %13 = dma.vmem_to_smem %s11, 16, [#allocation3], [#allocation2]
  %15 = dma.done [#allocation2], 16
  %16 = sfence
  loop: start=0, step=1, limit=8
  $region2: #{retinaface_heads_forward.1} parent=0 // loop_pre_header
    _
  $region3: #{retinaface_heads_forward.1} parent=0 // loop_header
    %s18 = sphi 0, %s22
    %p19 = scmp.ge.s32.totalorder %s18, 8
    %s28 = sphi 0, %s30
    %s31 = sphi 0, %s28
    %s32 = sphi 0, %s31
    %s48 = sphi 0, %s32
    %s52 = sphi 0, %s52
    %s54 = sphi 0, %s52
    %s55 = sphi 0, %s54
    %s69 = sphi 0, %s55
    %s73 = sphi 0, %s73
    %s75 = sphi 0, %s73
    %s76 = sphi 0, %s75
    %s90 = sphi 0, %s76
    %s96 = sphi 0, %s98
    %s99 = sphi 0, %s96
    %s100 = sphi 0, %s99
    %s116 = sphi 0, %s100
  $region4: #{retinaface_heads_forward.1} parent=0 // loop_header_branch
    %21 = sbr.rel (%p19) target = $region8
  $region5: #{retinaface_heads_forward.1} parent=0 // loop_body
    %s23 = ssub.s32 %s18, 1
    %s24 = ssub.s32 %s18, 2
    %s25 = sadd.s32 %s18, 1
    %s26 = ssub.s32 %s18, %s25
    %p27 = scmp.eq.s32.totalorder %s26, 0
    %s29 = sadd.s32 %s28, 1
    %s30 = scalar_select %p27, %s28, %s29
    %p33 = pneg %p27
    %p34 = scmp.eq.s32.totalorder %s18, 5
    %p35 = por %p33, %p34
    %p36 = scmp.ne.s32.totalorder %s28, %s31
    %p37 = scmp.eq.s32.totalorder %s18, 0
    %p38 = por %p36, %p37
    %p39 = scmp.ne.s32.totalorder %s28, %s31
    %p40 = scmp.eq.s32.totalorder %s23, 5
    %p41 = por %p39, %p40
    %p42 = scmp.ne.s32.totalorder %s31, %s32
    %p43 = scmp.eq.s32.totalorder %s23, 0
    %p44 = por %p42, %p43
    %p45 = scmp.ne.s32.totalorder %s31, %s32
    %p46 = scmp.eq.s32.totalorder %s24, 5
    %p47 = por %p45, %p46
    %p49 = scmp.ne.s32.totalorder %s32, %s48
    %p50 = scmp.eq.s32.totalorder %s24, 0
    %p51 = por %p49, %p50
    %s53 = sadd.s32 %s52, 1
    %p56 = scmp.eq.s32.totalorder %s18, 5
    %p57 = scmp.ne.s32.totalorder %s52, %s54
    %p58 = scmp.eq.s32.totalorder %s18, 0
    %p59 = por %p57, %p58
    %p60 = scmp.ne.s32.totalorder %s52, %s54
    %p61 = scmp.eq.s32.totalorder %s23, 5
    %p62 = por %p60, %p61
    %p63 = scmp.ne.s32.totalorder %s54, %s55
    %p64 = scmp.eq.s32.totalorder %s23, 0
    %p65 = por %p63, %p64
    %p66 = scmp.ne.s32.totalorder %s54, %s55
    %p67 = scmp.eq.s32.totalorder %s24, 5
    %p68 = por %p66, %p67
    %p70 = scmp.ne.s32.totalorder %s55, %s69
    %p71 = scmp.eq.s32.totalorder %s24, 0
    %p72 = por %p70, %p71
    %s74 = sadd.s32 %s73, 1
    %p77 = scmp.eq.s32.totalorder %s18, 5
    %p78 = scmp.ne.s32.totalorder %s73, %s75
    %p79 = scmp.eq.s32.totalorder %s18, 0
    %p80 = por %p78, %p79
    %p81 = scmp.ne.s32.totalorder %s73, %s75
    %p82 = scmp.eq.s32.totalorder %s23, 5
    %p83 = por %p81, %p82
    %p84 = scmp.ne.s32.totalorder %s75, %s76
    %p85 = scmp.eq.s32.totalorder %s23, 0
    %p86 = por %p84, %p85
    %p87 = scmp.ne.s32.totalorder %s75, %s76
    %p88 = scmp.eq.s32.totalorder %s24, 5
    %p89 = por %p87, %p88
    %p91 = scmp.ne.s32.totalorder %s76, %s90
    %p92 = scmp.eq.s32.totalorder %s24, 0
    %p93 = por %p91, %p92
    %s94 = ssub.s32 %s18, %s25
    %p95 = scmp.eq.s32.totalorder %s94, 0
    %s97 = sadd.s32 %s96, 1
    %s98 = scalar_select %p95, %s96, %s97
    %p101 = pneg %p95
    %p102 = scmp.eq.s32.totalorder %s18, 5
    %p103 = por %p101, %p102
    %p104 = scmp.ne.s32.totalorder %s96, %s99
    %p105 = scmp.eq.s32.totalorder %s18, 0
    %p106 = por %p104, %p105
    %p107 = scmp.ne.s32.totalorder %s96, %s99
    %p108 = scmp.eq.s32.totalorder %s23, 5
    %p109 = por %p107, %p108
    %p110 = scmp.ne.s32.totalorder %s99, %s100
    %p111 = scmp.eq.s32.totalorder %s23, 0
    %p112 = por %p110, %p111
    %p113 = scmp.ne.s32.totalorder %s99, %s100
    %p114 = scmp.eq.s32.totalorder %s24, 5
    %p115 = por %p113, %p114
    %p117 = scmp.ne.s32.totalorder %s100, %s116
    %p118 = scmp.eq.s32.totalorder %s24, 0
    %p119 = por %p117, %p118
    %p120 = scmp.le.s32.totalorder 1, %s18
    %p121 = scmp.lt.s32.totalorder %s18, 7
    %p122 = pnand %p120, %p121
    %p123 = pneg %p122
    // Predicated region
    $region9: #{retinaface_heads_forward.1} parent=5 // pred_check
      _
    $region10: #{retinaface_heads_forward.1} parent=5 // pred_check_branch
      %125 = sbr.rel (%p122) target = $region12
    $region11: #{retinaface_heads_forward.1} parent=5 // pred_region
      %s126 = ssub.s32 %s18, 1
      // Predicated region
      $region13: #{retinaface_heads_forward.1} parent=11 // pred_check
        %p127 = pneg %p65
      $region14: #{retinaface_heads_forward.1} parent=11 // pred_check_branch
        %129 = sbr.rel (%p127) target = $region16
      $region15: #{retinaface_heads_forward.1} parent=11 // pred_region
        _
      $region16: #{retinaface_heads_forward.1} parent=11 // pred_fallthru
        _
      // Predicated region
      $region17: #{retinaface_heads_forward.1} parent=11 // pred_check
        %p130 = pneg %p86
      $region18: #{retinaface_heads_forward.1} parent=11 // pred_check_branch
        %132 = sbr.rel (%p130) target = $region20
      $region19: #{retinaface_heads_forward.1} parent=11 // pred_region
        _
      $region20: #{retinaface_heads_forward.1} parent=11 // pred_fallthru
        _
    $region12: #{retinaface_heads_forward.1} parent=5 // pred_fallthru
      _
    %p133 = scmp.lt.s32.totalorder %s18, 6
    // Predicated region
    $region21: #{retinaface_heads_forward.1} parent=5 // pred_check
      %p134 = pneg %p133
    $region22: #{retinaface_heads_forward.1} parent=5 // pred_check_branch
      %136 = sbr.rel (%p134) target = $region24
    $region23: #{retinaface_heads_forward.1} parent=5 // pred_region
      // Predicated region
      $region25: #{retinaface_heads_forward.1} parent=23 // pred_check
        %p137 = pneg %p38
      $region26: #{retinaface_heads_forward.1} parent=23 // pred_check_branch
        %139 = sbr.rel (%p137) target = $region28
      $region27: #{retinaface_heads_forward.1} parent=23 // pred_region
        %s140 = smul.u32 16, %s18
        %p141 = scmp.lt.s32.totalorder %s140, 95
        %s142 = scalar_select %p141, %s140, 95
        %s143 = smul.addr %s142, 4
        %s144 = scalar_lea.vmem %s1, %s143
        %s145 = smul.u32 16, %s18
      $region28: #{retinaface_heads_forward.1} parent=23 // pred_fallthru
        _
    $region24: #{retinaface_heads_forward.1} parent=5 // pred_fallthru
      _
    %p146 = scmp.le.s32.totalorder 1, %s18
    %p147 = scmp.lt.s32.totalorder %s18, 7
    %p148 = pnand %p146, %p147
    %p149 = pneg %p148
    // Predicated region
    $region29: #{retinaface_heads_forward.1} parent=5 // pred_check
      _
    $region30: #{retinaface_heads_forward.1} parent=5 // pred_check_branch
      %151 = sbr.rel (%p148) target = $region32
    $region31: #{retinaface_heads_forward.1} parent=5 // pred_region
      %s152 = ssub.s32 %s18, 1
      %s153 = smul.u32 16, %s23
      %p154 = scmp.lt.s32.totalorder %s153, 95
      %s155 = scalar_select %p154, %s153, 95
      %s156 = smul.addr %s155, 4
      %s157 = scalar_lea.vmem %s1, %s156
      %p158 = pneg %p44
      %p159 = pneg %p41
      %p160 = pneg %p65
      %p161 = pneg %p62
      %p162 = pneg %p86
      %p163 = pneg %p83
      %p164 = pneg %p112
      %p165 = pneg %p109
      %s166 = smul.u32 16, %s23
      %p167 = scmp.lt.s32.totalorder %s166, 95
      %s168 = scalar_select %p167, %s166, 95
      %s169 = smul.addr %s168, 4
      %s170 = scalar_lea.vmem %s4, %s169
      %s171 = smul.u32 16, %s23
      %p172 = scmp.lt.s32.totalorder %s171, 95
      %s173 = scalar_select %p172, %s171, 95
      %s174 = smul.addr %s173, 4
      %s175 = scalar_lea.vmem %s1, %s174
      %s176 = smul.u32 16, %s23
      %s177 = smul.u32 16, %s23
      %p178 = scmp.lt.s32.totalorder %s177, 95
      %s179 = scalar_select %p178, %s177, 95
      %s180 = smul.addr %s179, 4
      %s181 = scalar_lea.vmem %s4, %s180
      %s182 = smul.u32 16, %s23
      %s184 = sld [smem:[#allocation3 + %s23]]
      %v185 = vld [vmem:[%s175] sm:$0xf]
      %v186 = vld [vmem:[%s175 + $0x4] sm:$0xf]
      %v187 = vld [vmem:[%s175 + $0x8] sm:$0xf]
      %v188 = vld [vmem:[%s175 + $0xc] sm:$0xf]
      %v189 = vld [vmem:[%s175 + $0x10] sm:$0xf]
      %v190 = vld [vmem:[%s175 + $0x14] sm:$0xf]
      %v191 = vld [vmem:[%s175 + $0x18] sm:$0xf]
      %v192 = vld [vmem:[%s175 + $0x1c] sm:$0xf]
      %v193 = vld [vmem:[%s175 + $0x20] sm:$0xf]
      %v194 = vld [vmem:[%s175 + $0x24] sm:$0xf]
      %v195 = vld [vmem:[%s175 + $0x28] sm:$0xf]
      %v196 = vld [vmem:[%s175 + $0x2c] sm:$0xf]
      %v197 = vld [vmem:[%s175 + $0x30] sm:$0xf]
      %v198 = vld [vmem:[%s175 + $0x34] sm:$0xf]
      %v199 = vld [vmem:[%s175 + $0x38] sm:$0xf]
      %v200 = vld [vmem:[%s175 + $0x3c] sm:$0xf]
      %s201 = smul.u32 %s184, 8
      %s202 = smul.addr %s201, 4
      %s203 = scalar_lea.vmem %s2, %s202
      %v204 = vld [vmem:[%s203] sm:$0xf]
      %v205 = vld [vmem:[%s203 + $0x4] sm:$0xf]
      %v206 = vld [vmem:[%s203 + $0x8] sm:$0xf]
      %v207 = vld [vmem:[%s203 + $0xc] sm:$0xf]
      %v208 = vld [vmem:[%s203 + $0x10] sm:$0xf]
      %v209 = vld [vmem:[%s203 + $0x14] sm:$0xf]
      %v210 = vld [vmem:[%s203 + $0x18] sm:$0xf]
      %v211 = vld [vmem:[%s203 + $0x1c] sm:$0xf]
      %s212 = scalar_lea.vmem %s3, %s184
      %v213 = vld [vmem:[%s212] sm:$0x1]
      %v215 = vperm.slane %v213, 0
      %v233 = vunpack.c.l.b16 %v185
      %v234 = vunpack.c.l.b16 %v186
      %v235 = vunpack.c.l.b16 %v187
      %v236 = vunpack.c.l.b16 %v188
      %v237 = vunpack.c.l.b16 %v189
      %v238 = vunpack.c.l.b16 %v190
      %v239 = vunpack.c.l.b16 %v191
      %v240 = vunpack.c.l.b16 %v192
      %v241 = vunpack.c.l.b16 %v193
      %v242 = vunpack.c.l.b16 %v194
      %v243 = vunpack.c.l.b16 %v195
      %v244 = vunpack.c.l.b16 %v196
      %v245 = vunpack.c.l.b16 %v197
      %v246 = vunpack.c.l.b16 %v198
      %v247 = vunpack.c.l.b16 %v199
      %v248 = vunpack.c.l.b16 %v200
      %v249 = vpack.c.b16 %v234, %v233
      %v250 = vpack.c.b16 %v236, %v235
      %v251 = vpack.c.b16 %v238, %v237
      %v252 = vpack.c.b16 %v240, %v239
      %v253 = vpack.c.b16 %v242, %v241
      %v254 = vpack.c.b16 %v244, %v243
      %v255 = vpack.c.b16 %v246, %v245
      %v256 = vpack.c.b16 %v248, %v247
      %v265 = vunpack.c.l.b16 %v204
      %v266 = vunpack.c.l.b16 %v205
      %v267 = vunpack.c.l.b16 %v206
      %v268 = vunpack.c.l.b16 %v207
      %v269 = vunpack.c.l.b16 %v208
      %v270 = vunpack.c.l.b16 %v209
      %v271 = vunpack.c.l.b16 %v210
      %v272 = vunpack.c.l.b16 %v211
      %v273 = vpack.c.b16 %v266, %v265
      %v274 = vpack.c.b16 %v268, %v267
      %v275 = vpack.c.b16 %v270, %v269
      %v276 = vpack.c.b16 %v272, %v271
      %vm281 = vcmask 523264
      %v283 = vsel %vm281, %v249, 0
      %v286 = vsel %vm281, %v250, 0
      %v289 = vsel %vm281, %v251, 0
      %v292 = vsel %vm281, %v252, 0
      %v295 = vsel %vm281, %v253, 0
      %v298 = vsel %vm281, %v254, 0
      %v301 = vsel %vm281, %v255, 0
      %v304 = vsel %vm281, %v256, 0
      %306 = vmatpush.bf16.msra.mxu0 0
      %307 = vmatpush.bf16.msra.mxu0 0
      %308 = vmatpush.bf16.msra.mxu0 0
      %309 = vmatpush.bf16.msra.mxu0 0
      %310 = vmatpush.bf16.msra.mxu0 %v276
      %311 = vmatpush.bf16.msra.mxu0 %v275
      %312 = vmatpush.bf16.msra.mxu0 %v274
      %313 = vmatpush.bf16.msra.mxu0 %v273
      %314 = vmatmul.bf16.gmra.mxu0 %v283
      %v315 = vpop.f32.mrf.mxu0
      %v316 = vadd.f32 %v215, %v315
      %v317 = vpop.f32.mrf.mxu0
      %v318 = vadd.f32 %v215, %v317
      %319 = vmatmul.bf16.gmra.mxu0 %v286
      %v320 = vpop.f32.mrf.mxu0
      %v321 = vadd.f32 %v215, %v320
      %v322 = vpop.f32.mrf.mxu0
      %v323 = vadd.f32 %v215, %v322
      %324 = vmatmul.bf16.gmra.mxu0 %v289
      %v325 = vpop.f32.mrf.mxu0
      %v326 = vadd.f32 %v215, %v325
      %v327 = vpop.f32.mrf.mxu0
      %v328 = vadd.f32 %v215, %v327
      %329 = vmatmul.bf16.gmra.mxu0 %v292
      %v330 = vpop.f32.mrf.mxu0
      %v331 = vadd.f32 %v215, %v330
      %v332 = vpop.f32.mrf.mxu0
      %v333 = vadd.f32 %v215, %v332
      %334 = vmatmul.bf16.gmra.mxu0 %v295
      %v335 = vpop.f32.mrf.mxu0
      %v336 = vadd.f32 %v215, %v335
      %v337 = vpop.f32.mrf.mxu0
      %v338 = vadd.f32 %v215, %v337
      %339 = vmatmul.bf16.gmra.mxu0 %v298
      %v340 = vpop.f32.mrf.mxu0
      %v341 = vadd.f32 %v215, %v340
      %v342 = vpop.f32.mrf.mxu0
      %v343 = vadd.f32 %v215, %v342
      %344 = vmatmul.bf16.gmra.mxu0 %v301
      %v345 = vpop.f32.mrf.mxu0
      %v346 = vadd.f32 %v215, %v345
      %v347 = vpop.f32.mrf.mxu0
      %v348 = vadd.f32 %v215, %v347
      %349 = vmatmul.bf16.gmra.mxu0 %v304
      %v350 = vpop.f32.mrf.mxu0
      %v351 = vadd.f32 %v215, %v350
      %v352 = vpop.f32.mrf.mxu0
      %v353 = vadd.f32 %v215, %v352
      %354 = vdwg.mxu0
      %v355 = vpack.c.bf16 %v316, %v316
      %v356 = vpack.c.bf16 %v318, %v318
      %v357 = vpack.c.bf16 %v321, %v321
      %v358 = vpack.c.bf16 %v323, %v323
      %v359 = vpack.c.bf16 %v326, %v326
      %v360 = vpack.c.bf16 %v328, %v328
      %v361 = vpack.c.bf16 %v331, %v331
      %v362 = vpack.c.bf16 %v333, %v333
      %v363 = vpack.c.bf16 %v336, %v336
      %v364 = vpack.c.bf16 %v338, %v338
      %v365 = vpack.c.bf16 %v341, %v341
      %v366 = vpack.c.bf16 %v343, %v343
      %v367 = vpack.c.bf16 %v346, %v346
      %v368 = vpack.c.bf16 %v348, %v348
      %v369 = vpack.c.bf16 %v351, %v351
      %v370 = vpack.c.bf16 %v353, %v353
      %371 = vst [vmem:[%s181] sm:$0xf] %v355
      %372 = vst [vmem:[%s181 + $0x4] sm:$0xf] %v356
      %373 = vst [vmem:[%s181 + $0x8] sm:$0xf] %v357
      %374 = vst [vmem:[%s181 + $0xc] sm:$0xf] %v358
      %375 = vst [vmem:[%s181 + $0x10] sm:$0xf] %v359
      %376 = vst [vmem:[%s181 + $0x14] sm:$0xf] %v360
      %377 = vst [vmem:[%s181 + $0x18] sm:$0xf] %v361
      %378 = vst [vmem:[%s181 + $0x1c] sm:$0xf] %v362
      %379 = vst [vmem:[%s181 + $0x20] sm:$0xf] %v363
      %380 = vst [vmem:[%s181 + $0x24] sm:$0xf] %v364
      %381 = vst [vmem:[%s181 + $0x28] sm:$0xf] %v365
      %382 = vst [vmem:[%s181 + $0x2c] sm:$0xf] %v366
      %383 = vst [vmem:[%s181 + $0x30] sm:$0xf] %v367
      %384 = vst [vmem:[%s181 + $0x34] sm:$0xf] %v368
      %385 = vst [vmem:[%s181 + $0x38] sm:$0xf] %v369
      %386 = vst [vmem:[%s181 + $0x3c] sm:$0xf] %v370
      %s387 = smul.u32 16, %s23
      %p388 = scmp.lt.s32.totalorder %s387, 95
      %s389 = scalar_select %p388, %s387, 95
      %s390 = smul.addr %s389, 4
      %s391 = scalar_lea.vmem %s4, %s390
      // Predicated region
      $region33: #{retinaface_heads_forward.1} parent=31 // pred_check
        %p392 = pneg %p109
      $region34: #{retinaface_heads_forward.1} parent=31 // pred_check_branch
        %394 = sbr.rel (%p392) target = $region36
      $region35: #{retinaface_heads_forward.1} parent=31 // pred_region
        %s395 = smul.u32 16, %s23
      $region36: #{retinaface_heads_forward.1} parent=31 // pred_fallthru
        _
    $region32: #{retinaface_heads_forward.1} parent=5 // pred_fallthru
      _
    %p396 = scmp.le.s32.totalorder 2, %s18
    // Predicated region
    $region37: #{retinaface_heads_forward.1} parent=5 // pred_check
      %p397 = pneg %p396
    $region38: #{retinaface_heads_forward.1} parent=5 // pred_check_branch
      %399 = sbr.rel (%p397) target = $region40
    $region39: #{retinaface_heads_forward.1} parent=5 // pred_region
      %s400 = ssub.s32 %s18, 2
      // Predicated region
      $region41: #{retinaface_heads_forward.1} parent=39 // pred_check
        %p401 = pneg %p115
      $region42: #{retinaface_heads_forward.1} parent=39 // pred_check_branch
        %403 = sbr.rel (%p401) target = $region44
      $region43: #{retinaface_heads_forward.1} parent=39 // pred_region
        %s404 = smul.u32 16, %s24
        %p405 = scmp.lt.s32.totalorder %s404, 95
        %s406 = scalar_select %p405, %s404, 95
        %s407 = smul.addr %s406, 4
        %s408 = scalar_lea.vmem %s4, %s407
      $region44: #{retinaface_heads_forward.1} parent=39 // pred_fallthru
        _
    $region40: #{retinaface_heads_forward.1} parent=5 // pred_fallthru
      _
  $region6: #{retinaface_heads_forward.1} parent=0 // loop_footer
    %s22 = sadd.s32 1, %s18
  $region7: #{retinaface_heads_forward.1} parent=0 // loop_footer_branch
    %17 = sbr.rel target = $region3
  $region8: #{retinaface_heads_forward.1} parent=0 // loop_exit
    _

</llo_original>
